<compile_context>
chip_gen: v6e
topology: v6e:2x2x1
jax: 0.10.0
libtpu: 0.0.40
codegen_flags: <defaults>
</compile_context>

<pallas_src>
import jax
import jax.numpy as jnp
import numpy as np
from jax.experimental import pallas as pl
from jax.experimental.pallas import tpu as pltpu


def _make_consistency_weight_kernel(ramp: str):
    """Builds the kernel body. Only the ramp type is baked in (static branch)."""

    def kernel(epoch_ref, max_w_ref, max_e_ref, out_ref):
        # epoch_ref / max_w_ref / max_e_ref: (1,) f32 SMEM refs (scalar path).
        # out_ref: (1, 1) f32 VMEM ref.
        mw = max_w_ref[0]

        if ramp not in ("sigmoid", "log", "exp"):
            # linear / default branch: ramp factor == 1.0 -> weight is just max_weight.
            out_ref[...] = jnp.full((1, 1), mw, dtype=jnp.float32)
            return

        e = epoch_ref[0]
        me = max_e_ref[0]

        # Splat the scalar epoch into a (1,1) f32 so the transcendental runs on the
        # vector EUP (no scalar-exp instruction exists on TPU).
        current = jnp.clip(jnp.full((1, 1), e, dtype=jnp.float32), 0.0, me)
        # NOTE: the ratio is used exactly once per branch, so a divide here costs the
        # same as precomputing 1/max_epoch and multiplying (max_epoch is runtime now).
        x = current / me

        if ramp == "sigmoid":
            phase = 1.0 - x
            ramps = jnp.exp(-5.0 * phase * phase)
        elif ramp == "log":
            ramps = 1.0 - jnp.exp(-5.0 * x)
        else:  # "exp"
            ramps = jnp.exp(5.0 * (x - 1.0))

        out_ref[...] = mw * ramps

    return kernel


def consistency_weight(epoch, max_weight, max_epoch, *, ramp: str = "sigmoid"):
    """JAX wrapper mirroring ConsistencyWeight.forward(epoch).

    `epoch`, `max_weight`, `max_epoch` may be python numbers or scalar arrays; only
    `ramp` is static (one Mosaic compile per ramp type). Returns a scalar float32.
    NOTE: like the original module, max_epoch == 0 is not guarded (yields NaN/Inf).
    """
    epoch_arr = jnp.asarray(epoch, dtype=jnp.float32).reshape(1)
    mw_arr = jnp.asarray(max_weight, dtype=jnp.float32).reshape(1)
    me_arr = jnp.asarray(max_epoch, dtype=jnp.float32).reshape(1)

    kernel = _make_consistency_weight_kernel(ramp)

    out = pl.pallas_call(
        kernel,
        out_shape=jax.ShapeDtypeStruct((1, 1), jnp.float32),
        in_specs=[
            pl.BlockSpec(memory_space=pltpu.SMEM),  # epoch
            pl.BlockSpec(memory_space=pltpu.SMEM),  # max_weight
            pl.BlockSpec(memory_space=pltpu.SMEM),  # max_epoch
        ],
        out_specs=pl.BlockSpec(memory_space=pltpu.VMEM),
    )(epoch_arr, mw_arr, me_arr)
    return out[0, 0]


def _reference(epoch, max_weight, max_epoch, ramp="sigmoid"):
    current = np.clip(epoch, 0.0, max_epoch)
    phase = 1.0 - current / max_epoch
    if ramp == "sigmoid":
        ramps = float(np.exp(-5.0 * phase * phase))
    elif ramp == "log":
        ramps = float(1 - np.exp(-5.0 * current / max_epoch))
    elif ramp == "exp":
        ramps = float(np.exp(5.0 * (current / max_epoch - 1)))
    else:
        ramps = 1.0
    return max_weight * ramps


if __name__ == "__main__":
    key = jax.random.PRNGKey(0)
    # deterministic "epoch" inputs, consistent with the module's scalar forward arg
    rand_epoch = float(
        jax.random.uniform(key, (), minval=0.0, maxval=10.0, dtype=jnp.float32)
    )
    epochs = [rand_epoch, 0.0, 3.5, 12.0]  # includes values below/above max_epoch

    max_weight = 30.0
    max_epoch = 7.0

    ok = True
    for ramp in ("sigmoid", "log", "exp", "linear"):
        for ep in epochs:
            w = consistency_weight(ep, max_weight, max_epoch, ramp=ramp)
            w = jax.block_until_ready(w)
            ref = _reference(ep, max_weight, max_epoch, ramp)
            if not np.allclose(np.asarray(w), ref, rtol=1e-5, atol=1e-5):
                ok = False
                print(f"MISMATCH ramp={ramp} epoch={ep}: kernel={float(w)} ref={ref}")

    if ok:
        print("KERNEL_OK")
</pallas_src>

<mosaic_0001>
module attributes {stable_mosaic.version = 11 : i64} {
  func.func @kernel(%arg0: memref<1xf32, #tpu.memory_space<smem>>, %arg1: memref<1xf32, #tpu.memory_space<smem>>, %arg2: memref<1xf32, #tpu.memory_space<smem>>, %arg3: memref<1x1xf32, #tpu.memory_space<vmem>>) attributes {dimension_semantics = [], scalar_prefetch = 0 : i64, scratch_operands = 0 : i64, tpu.core_type = #tpu.core_type<tc>} {
    %c0 = arith.constant 0 : index
    %0 = memref.load %arg1[%c0] : memref<1xf32, #tpu.memory_space<smem>>
    %c0_0 = arith.constant 0 : index
    %1 = memref.load %arg0[%c0_0] : memref<1xf32, #tpu.memory_space<smem>>
    %c0_1 = arith.constant 0 : index
    %2 = memref.load %arg2[%c0_1] : memref<1xf32, #tpu.memory_space<smem>>
    %3 = vector.broadcast %1 : f32 to vector<1x1xf32>
    %cst = arith.constant 0.000000e+00 : f32
    %4 = vector.broadcast %cst : f32 to vector<1x1xf32>
    %5 = arith.maximumf %4, %3 : vector<1x1xf32>
    %6 = vector.broadcast %2 : f32 to vector<1x1xf32>
    %7 = arith.minimumf %6, %5 : vector<1x1xf32>
    %8 = vector.broadcast %2 : f32 to vector<1x1xf32>
    %9 = arith.divf %7, %8 : vector<1x1xf32>
    %cst_2 = arith.constant 1.000000e+00 : f32
    %10 = vector.broadcast %cst_2 : f32 to vector<1x1xf32>
    %11 = arith.subf %10, %9 : vector<1x1xf32>
    %cst_3 = arith.constant -5.000000e+00 : f32
    %12 = vector.broadcast %cst_3 : f32 to vector<1x1xf32>
    %13 = arith.mulf %12, %11 : vector<1x1xf32>
    %14 = arith.mulf %13, %11 : vector<1x1xf32>
    %15 = math.exp %14 : vector<1x1xf32>
    %16 = vector.broadcast %0 : f32 to vector<1x1xf32>
    %17 = arith.mulf %16, %15 : vector<1x1xf32>
    %c0_4 = arith.constant 0 : index
    %c0_5 = arith.constant 0 : index
    %18 = vector.load %arg3[%c0_4, %c0_5] : memref<1x1xf32, #tpu.memory_space<vmem>>, vector<1x1xf32>
    tpu.vector_store %arg3[%c0_4, %c0_5], %17 {strides = array<i32>} : memref<1x1xf32, #tpu.memory_space<vmem>>, vector<1x1xf32>,
    return
  }
}

</mosaic_0001>

<llo_original>
// kernel: tpu_custom_call.1
$region0: #{tpu_custom_call.1}
  #allocation0 [shape = 'u32[]', space=smem, size = 0x4, offset = 0x4, fixed_abs, tag = 'smem constant byte address 0x4 - core index']
  #allocation1 [shape = 'u32[144,128]{1,0:T(1,128)}', space=vmem, size = 0x12000, scoped, tag = 'internal scratch']
  #allocation2 [shape = 'f32[1]{0:T(128)S(6)}', space=smem, size = 0x200, scoped, tag = 'scoped memory for tpu_custom_call.1']
  #allocation3 [shape = 'f32[1]{0:T(128)S(6)}', space=smem, size = 0x200, scoped, tag = 'scoped memory for tpu_custom_call.1']
  #allocation4 [shape = 'f32[1]{0:T(128)S(6)}', space=smem, size = 0x200, scoped, tag = 'scoped memory for tpu_custom_call.1']
  %s0 = inlined_call_operand.<no memory space> [shape: f32[1], index: 0, kind: input, shape index: {}]
  %s1 = inlined_call_operand.<no memory space> [shape: f32[1], index: 1, kind: input, shape index: {}]
  %s2 = inlined_call_operand.<no memory space> [shape: f32[1], index: 2, kind: input, shape index: {}]
  %s3 = inlined_call_operand.hbm [shape: f32[1,1], index: 3, kind: output, shape index: {}]
  %s4 = sld [smem:[#allocation0]]
  $region22: #{tpu_custom_call.1} parent=0
    _
  %s6 = ssub.s32 1, %s4
  %s7 = scalar_select 0, %s6, %s4
  %8 = sst [smem:[#allocation2]] %s0
  %9 = sst [smem:[#allocation3]] %s1
  %10 = sst [smem:[#allocation4]] %s2
  $region1: #{tpu_custom_call.1} parent=0
    #allocation5 [shape = 'u8[512]{0}', space=vmem, size = 0x400, scoped, tag = 'output window, operand 0, single buffered']
    #allocation6 [shape = 's32[1]{0}', space=sflag, size = 0x4, scoped, tag = 'scoped memory for tpu_custom_call.1']
    %11 = vsyncpa [#allocation6], 0
    // Predicated region
    $region2: #{tpu_custom_call.1} parent=1 // pred_check
      _
    $region3: #{tpu_custom_call.1} parent=1 // pred_check_branch
      %13 = sbr.rel (0) target = $region5
    $region4: #{tpu_custom_call.1} parent=1 // pred_region
      _
    $region5: #{tpu_custom_call.1} parent=1 // pred_fallthru
      _
    // Predicated region
    $region6: #{tpu_custom_call.1} parent=1 // pred_check
      _
    $region7: #{tpu_custom_call.1} parent=1 // pred_check_branch
      %15 = sbr.rel (0) target = $region9
    $region8: #{tpu_custom_call.1} parent=1 // pred_region
      _
    $region9: #{tpu_custom_call.1} parent=1 // pred_fallthru
      _
    // Predicated region
    $region10: #{tpu_custom_call.1} parent=1 // pred_check
      _
    $region11: #{tpu_custom_call.1} parent=1 // pred_check_branch
      %17 = sbr.rel (0) target = $region13
    $region12: #{tpu_custom_call.1} parent=1 // pred_region
      _
    $region13: #{tpu_custom_call.1} parent=1 // pred_fallthru
      _
    %s18 = sld [smem:[#allocation3]]
    %s19 = sld [smem:[#allocation2]]
    %s20 = sld [smem:[#allocation4]]
    %v21 = vstv %s19
    %v22 = vmax.f32 %v21, 0.0
    %v23 = vstv %s20
    %v24 = vmin.f32 %v23, %v22
    %v25 = vrcp.pop %v23
    %v26 = vmul.f32 %v24, %v25
    %v27 = vsub.f32 1.0, %v26
    %v28 = vmul.f32 %v27, -5.0
    %v29 = vmul.f32 %v28, %v27
    %v30 = vmul.f32 %v29, 1.442695
    %v31 = vpow.pop %v30
    %v32 = vstv %s18
    %v33 = vmul.f32 %v32, %v31
    %vm34 = vcmask 0
    %35 = vst.msk [vmem:[#allocation5] sm:$0x1] %vm34, %v33
    // Predicated region
    $region14: #{tpu_custom_call.1} parent=1 // pred_check
      _
    $region15: #{tpu_custom_call.1} parent=1 // pred_check_branch
      %37 = sbr.rel (0) target = $region17
    $region16: #{tpu_custom_call.1} parent=1 // pred_region
      %s39 = ssub.s32 16, 16
      %40 = vsyncadd [#allocation6], %s39
      %s42 = sshll.u32 [#allocation5], 4
      %s43 = int_to_ptr.vmem [resolvable:$true] %s42
      %45 = dma.vmem_to_hbm [thread:$0]  %s43, 16, %s3, [#allocation6]
    $region17: #{tpu_custom_call.1} parent=1 // pred_fallthru
      _
    // Predicated region
    $region18: #{tpu_custom_call.1} parent=1 // pred_check
      _
    $region19: #{tpu_custom_call.1} parent=1 // pred_check_branch
      %47 = sbr.rel (0) target = $region21
    $region20: #{tpu_custom_call.1} parent=1 // pred_region
      %48 = dma.done [#allocation6], 16
    $region21: #{tpu_custom_call.1} parent=1 // pred_fallthru
      _
    %49 = vsyncpa [#allocation6], 1

</llo_original>
